<compile_context>
chip_gen: v6e
topology: v6e:2x2x1
jax: 0.10.0
libtpu: 0.0.40
codegen_flags: <defaults>
</compile_context>

<pallas_src>
import functools

import jax
import jax.numpy as jnp
from jax.experimental import pallas as pl
from jax.experimental.pallas import tpu as pltpu


def _ciou_kernel(pred_ref, tgt_ref, out_ref, acc_ref, *, n_true, tile_m):
    """pred_ref / tgt_ref: (4, tile_m, 128) f32 VMEM tiles.

    Leading axis is the coordinate plane [x1, y1, x2, y2]; every elementwise
    op below runs on a dense (tile_m, 128) tile.
    """
    step = pl.program_id(0)

    @pl.when(step == 0)
    def _init():
        acc_ref[...] = jnp.zeros_like(acc_ref)

    px1 = pred_ref[0]
    py1 = pred_ref[1]
    px2 = pred_ref[2]
    py2 = pred_ref[3]
    tx1 = tgt_ref[0]
    ty1 = tgt_ref[1]
    tx2 = tgt_ref[2]
    ty2 = tgt_ref[3]

    pred_area = (px2 - px1) * (py2 - py1)
    target_area = (tx2 - tx1) * (ty2 - ty1)

    inter_w = jnp.maximum(jnp.minimum(px2, tx2) - jnp.maximum(px1, tx1), 0.0)
    inter_h = jnp.maximum(jnp.minimum(py2, ty2) - jnp.maximum(py1, ty1), 0.0)
    inter_area = inter_w * inter_h

    union_area = pred_area + target_area - inter_area
    iou = inter_area / (union_area + 1e-6)

    center_distance = (px1 + px2 - tx1 - tx2) ** 2 + (py1 + py2 - ty1 - ty2) ** 2
    diag_distance = (jnp.maximum(px2, tx2) - jnp.minimum(px1, tx1)) ** 2 + \
                    (jnp.maximum(py2, ty2) - jnp.minimum(py1, ty1)) ** 2

    ciou = iou - center_distance / (diag_distance + 1e-6)
    loss = 1.0 - ciou                                      # (tile_m, 128)

    # Mask out padded boxes so they do not bias the mean.
    row = jax.lax.broadcasted_iota(jnp.int32, (tile_m, 128), 0)
    lane = jax.lax.broadcasted_iota(jnp.int32, (tile_m, 128), 1)
    gidx = (step * tile_m + row) * 128 + lane
    loss = jnp.where(gidx < n_true, loss, 0.0)

    # Elementwise accumulation only; defer the cross-lane reduction.
    acc_ref[...] += loss

    @pl.when(step == pl.num_programs(0) - 1)
    def _finalize():
        total = jnp.sum(acc_ref[...], keepdims=True)        # (1, 1)
        out_ref[...] = total * (1.0 / jnp.float32(n_true))


def ciou_loss(pred_boxes, target_boxes, *, tile_m=256):
    """pred_boxes, target_boxes: (N, 4) float32 with columns [x1, y1, x2, y2]."""
    assert pred_boxes.shape == target_boxes.shape
    assert pred_boxes.shape[-1] == 4
    n = pred_boxes.shape[0]

    # Boxes are packed 128 per lane-row; m = number of rows of 128 boxes.
    m = (n + 127) // 128
    if tile_m >= m:
        tile_m_eff = m                           # single grid step, block == array
    else:
        tile_m_eff = max(8, (tile_m // 8) * 8)   # keep sublane (8) alignment
    m_pad = ((m + tile_m_eff - 1) // tile_m_eff) * tile_m_eff
    n_pad = m_pad * 128
    num_tiles = m_pad // tile_m_eff

    # Glue: pad and repack (N, 4) -> (4, m_pad, 128) lane-dense planes.
    # TODO(synk): in production, produce boxes coordinate-major upstream (or use
    # allow_input_fusion) so this relayout pass over HBM disappears.
    def pack(b):
        b = jnp.asarray(b, jnp.float32)
        b = jnp.pad(b, ((0, n_pad - n), (0, 0)))
        return b.T.reshape(4, m_pad, 128)

    pred_p = pack(pred_boxes)
    tgt_p = pack(target_boxes)

    kernel = functools.partial(_ciou_kernel, n_true=n, tile_m=tile_m_eff)

    # TODO(synk): for very large N on v7x, add a leading size-2 "parallel" grid
    # axis (one partial sum per TensorCore) and combine in the wrapper.
    out = pl.pallas_call(
        kernel,
        out_shape=jax.ShapeDtypeStruct((1, 1), jnp.float32),
        grid=(num_tiles,),
        in_specs=[
            pl.BlockSpec((4, tile_m_eff, 128), lambda i: (0, i, 0)),
            pl.BlockSpec((4, tile_m_eff, 128), lambda i: (0, i, 0)),
        ],
        out_specs=pl.BlockSpec((1, 1), lambda i: (0, 0)),
        scratch_shapes=[pltpu.VMEM((tile_m_eff, 128), jnp.float32)],
        compiler_params=pltpu.CompilerParams(
            dimension_semantics=("arbitrary",)),
    )(pred_p, tgt_p)
    return out[0, 0]


def _ciou_loss_ref(pred_boxes, target_boxes):
    """Pure-JAX reference (mirrors the PyTorch forward exactly)."""
    p, t = pred_boxes, target_boxes
    pred_w = p[:, 2] - p[:, 0]
    pred_h = p[:, 3] - p[:, 1]
    target_w = t[:, 2] - t[:, 0]
    target_h = t[:, 3] - t[:, 1]
    pred_area = pred_w * pred_h
    target_area = target_w * target_h
    inter_w = jnp.maximum(jnp.minimum(p[:, 2], t[:, 2]) - jnp.maximum(p[:, 0], t[:, 0]), 0.0)
    inter_h = jnp.maximum(jnp.minimum(p[:, 3], t[:, 3]) - jnp.maximum(p[:, 1], t[:, 1]), 0.0)
    inter_area = inter_w * inter_h
    union_area = pred_area + target_area - inter_area
    iou = inter_area / (union_area + 1e-6)
    center_distance = (p[:, 0] + p[:, 2] - t[:, 0] - t[:, 2]) ** 2 + \
                      (p[:, 1] + p[:, 3] - t[:, 1] - t[:, 3]) ** 2
    diag_distance = (jnp.maximum(p[:, 2], t[:, 2]) - jnp.minimum(p[:, 0], t[:, 0])) ** 2 + \
                    (jnp.maximum(p[:, 3], t[:, 3]) - jnp.minimum(p[:, 1], t[:, 1])) ** 2
    ciou = iou - center_distance / (diag_distance + 1e-6)
    return (1.0 - ciou).mean()


if __name__ == "__main__":
    key = jax.random.PRNGKey(0)

    def make_boxes(k, n):
        k1, k2 = jax.random.split(k)
        xy = jax.random.uniform(k1, (n, 2), jnp.float32, minval=0.0, maxval=10.0)
        wh = jax.random.uniform(k2, (n, 2), jnp.float32, minval=0.5, maxval=5.0)
        return jnp.concatenate([xy, xy + wh], axis=1)   # valid [x1,y1,x2,y2]

    # Case 1: N not a multiple of 128 (exercises pad + mask), single grid step.
    kp, kt, key = jax.random.split(key, 3)
    pred1 = make_boxes(kp, 100)
    tgt1 = make_boxes(kt, 100)
    loss1 = ciou_loss(pred1, tgt1)
    jax.block_until_ready(loss1)
    ref1 = _ciou_loss_ref(pred1, tgt1)
    assert jnp.allclose(loss1, ref1, rtol=1e-5, atol=1e-5), (loss1, ref1)

    # Case 2: multi-step grid with the cross-step accumulator (grid=(2,)).
    kp, kt, key = jax.random.split(key, 3)
    pred2 = make_boxes(kp, 2000)
    tgt2 = make_boxes(kt, 2000)
    loss2 = ciou_loss(pred2, tgt2, tile_m=8)
    jax.block_until_ready(loss2)
    ref2 = _ciou_loss_ref(pred2, tgt2)
    assert jnp.allclose(loss2, ref2, rtol=1e-5, atol=1e-5), (loss2, ref2)

    print("KERNEL_OK")
</pallas_src>

<mosaic_0001>
module attributes {stable_mosaic.version = 11 : i64} {
  func.func @_ciou_kernel(%arg0: i32, %arg1: memref<4x1x128xf32, #tpu.memory_space<vmem>>, %arg2: memref<4x1x128xf32, #tpu.memory_space<vmem>>, %arg3: memref<1x1xf32, #tpu.memory_space<vmem>>, %arg4: memref<1x128xf32, #tpu.memory_space<vmem>>) attributes {dimension_semantics = [#tpu.dimension_semantics<arbitrary>], iteration_bounds = array<i64: 1>, scalar_prefetch = 0 : i64, scratch_operands = 1 : i64, tpu.core_type = #tpu.core_type<tc>, window_params = [{transform_indices = @transform_0, window_bounds = array<i64: 4, 1, 128>}, {transform_indices = @transform_1, window_bounds = array<i64: 4, 1, 128>}, {pipeline_mode = #tpu.pipeline_mode<synchronous>, transform_indices = @transform_2, window_bounds = array<i64: 1, 1>}]} {
    %c0_i32 = arith.constant 0 : i32
    %0 = arith.cmpi eq, %arg0, %c0_i32 : i32
    %1 = arith.extui %0 : i1 to i32
    %c0_i32_0 = arith.constant 0 : i32
    %2 = arith.cmpi ne, %1, %c0_i32_0 : i32
    scf.if %2 {
      %cst_32 = arith.constant 0.000000e+00 : f32
      %83 = vector.broadcast %cst_32 : f32 to vector<1x128xf32>
      %c0_33 = arith.constant 0 : index
      %c0_34 = arith.constant 0 : index
      %84 = vector.load %arg4[%c0_33, %c0_34] : memref<1x128xf32, #tpu.memory_space<vmem>>, vector<1x128xf32>
      tpu.vector_store %arg4[%c0_33, %c0_34], %83 {strides = array<i32>} : memref<1x128xf32, #tpu.memory_space<vmem>>, vector<1x128xf32>,
    } else {
    }
    %c0 = arith.constant 0 : index
    %c0_1 = arith.constant 0 : index
    %c0_2 = arith.constant 0 : index
    %3 = vector.load %arg1[%c0, %c0_1, %c0_2] : memref<4x1x128xf32, #tpu.memory_space<vmem>>, vector<1x1x128xf32>
    %4 = vector.shape_cast %3 : vector<1x1x128xf32> to vector<1x128xf32>
    %c1 = arith.constant 1 : index
    %c0_3 = arith.constant 0 : index
    %c0_4 = arith.constant 0 : index
    %5 = vector.load %arg1[%c1, %c0_3, %c0_4] : memref<4x1x128xf32, #tpu.memory_space<vmem>>, vector<1x1x128xf32>
    %6 = vector.shape_cast %5 : vector<1x1x128xf32> to vector<1x128xf32>
    %c2 = arith.constant 2 : index
    %c0_5 = arith.constant 0 : index
    %c0_6 = arith.constant 0 : index
    %7 = vector.load %arg1[%c2, %c0_5, %c0_6] : memref<4x1x128xf32, #tpu.memory_space<vmem>>, vector<1x1x128xf32>
    %8 = vector.shape_cast %7 : vector<1x1x128xf32> to vector<1x128xf32>
    %c3 = arith.constant 3 : index
    %c0_7 = arith.constant 0 : index
    %c0_8 = arith.constant 0 : index
    %9 = vector.load %arg1[%c3, %c0_7, %c0_8] : memref<4x1x128xf32, #tpu.memory_space<vmem>>, vector<1x1x128xf32>
    %10 = vector.shape_cast %9 : vector<1x1x128xf32> to vector<1x128xf32>
    %c0_9 = arith.constant 0 : index
    %c0_10 = arith.constant 0 : index
    %c0_11 = arith.constant 0 : index
    %11 = vector.load %arg2[%c0_9, %c0_10, %c0_11] : memref<4x1x128xf32, #tpu.memory_space<vmem>>, vector<1x1x128xf32>
    %12 = vector.shape_cast %11 : vector<1x1x128xf32> to vector<1x128xf32>
    %c1_12 = arith.constant 1 : index
    %c0_13 = arith.constant 0 : index
    %c0_14 = arith.constant 0 : index
    %13 = vector.load %arg2[%c1_12, %c0_13, %c0_14] : memref<4x1x128xf32, #tpu.memory_space<vmem>>, vector<1x1x128xf32>
    %14 = vector.shape_cast %13 : vector<1x1x128xf32> to vector<1x128xf32>
    %c2_15 = arith.constant 2 : index
    %c0_16 = arith.constant 0 : index
    %c0_17 = arith.constant 0 : index
    %15 = vector.load %arg2[%c2_15, %c0_16, %c0_17] : memref<4x1x128xf32, #tpu.memory_space<vmem>>, vector<1x1x128xf32>
    %16 = vector.shape_cast %15 : vector<1x1x128xf32> to vector<1x128xf32>
    %c3_18 = arith.constant 3 : index
    %c0_19 = arith.constant 0 : index
    %c0_20 = arith.constant 0 : index
    %17 = vector.load %arg2[%c3_18, %c0_19, %c0_20] : memref<4x1x128xf32, #tpu.memory_space<vmem>>, vector<1x1x128xf32>
    %18 = vector.shape_cast %17 : vector<1x1x128xf32> to vector<1x128xf32>
    %19 = arith.subf %8, %4 : vector<1x128xf32>
    %20 = arith.subf %10, %6 : vector<1x128xf32>
    %21 = arith.mulf %19, %20 : vector<1x128xf32>
    %22 = arith.subf %16, %12 : vector<1x128xf32>
    %23 = arith.subf %18, %14 : vector<1x128xf32>
    %24 = arith.mulf %22, %23 : vector<1x128xf32>
    %25 = arith.minimumf %8, %16 : vector<1x128xf32>
    %26 = arith.maximumf %4, %12 : vector<1x128xf32>
    %27 = arith.subf %25, %26 : vector<1x128xf32>
    %cst = arith.constant 0.000000e+00 : f32
    %28 = vector.broadcast %cst : f32 to vector<1x128xf32>
    %29 = arith.maximumf %27, %28 : vector<1x128xf32>
    %30 = arith.minimumf %10, %18 : vector<1x128xf32>
    %31 = arith.maximumf %6, %14 : vector<1x128xf32>
    %32 = arith.subf %30, %31 : vector<1x128xf32>
    %cst_21 = arith.constant 0.000000e+00 : f32
    %33 = vector.broadcast %cst_21 : f32 to vector<1x128xf32>
    %34 = arith.maximumf %32, %33 : vector<1x128xf32>
    %35 = arith.mulf %29, %34 : vector<1x128xf32>
    %36 = arith.addf %21, %24 : vector<1x128xf32>
    %37 = arith.subf %36, %35 : vector<1x128xf32>
    %cst_22 = arith.constant 9.99999997E-7 : f32
    %38 = vector.broadcast %cst_22 : f32 to vector<1x128xf32>
    %39 = arith.addf %37, %38 : vector<1x128xf32>
    %40 = arith.divf %35, %39 : vector<1x128xf32>
    %41 = arith.addf %4, %8 : vector<1x128xf32>
    %42 = arith.subf %41, %12 : vector<1x128xf32>
    %43 = arith.subf %42, %16 : vector<1x128xf32>
    %44 = arith.mulf %43, %43 : vector<1x128xf32>
    %45 = arith.addf %6, %10 : vector<1x128xf32>
    %46 = arith.subf %45, %14 : vector<1x128xf32>
    %47 = arith.subf %46, %18 : vector<1x128xf32>
    %48 = arith.mulf %47, %47 : vector<1x128xf32>
    %49 = arith.addf %44, %48 : vector<1x128xf32>
    %50 = arith.maximumf %8, %16 : vector<1x128xf32>
    %51 = arith.minimumf %4, %12 : vector<1x128xf32>
    %52 = arith.subf %50, %51 : vector<1x128xf32>
    %53 = arith.mulf %52, %52 : vector<1x128xf32>
    %54 = arith.maximumf %10, %18 : vector<1x128xf32>
    %55 = arith.minimumf %6, %14 : vector<1x128xf32>
    %56 = arith.subf %54, %55 : vector<1x128xf32>
    %57 = arith.mulf %56, %56 : vector<1x128xf32>
    %58 = arith.addf %53, %57 : vector<1x128xf32>
    %cst_23 = arith.constant 9.99999997E-7 : f32
    %59 = vector.broadcast %cst_23 : f32 to vector<1x128xf32>
    %60 = arith.addf %58, %59 : vector<1x128xf32>
    %61 = arith.divf %49, %60 : vector<1x128xf32>
    %62 = arith.subf %40, %61 : vector<1x128xf32>
    %cst_24 = arith.constant 1.000000e+00 : f32
    %63 = vector.broadcast %cst_24 : f32 to vector<1x128xf32>
    %64 = arith.subf %63, %62 : vector<1x128xf32>
    %65 = tpu.iota {dimensions = array<i32: 0>} : vector<1x128xi32>
    %66 = tpu.iota {dimensions = array<i32: 1>} : vector<1x128xi32>
    %c1_i32 = arith.constant 1 : i32
    %67 = arith.muli %arg0, %c1_i32 : i32
    %68 = vector.broadcast %67 : i32 to vector<1x128xi32>
    %69 = arith.addi %68, %65 : vector<1x128xi32>
    %c128_i32 = arith.constant 128 : i32
    %70 = vector.broadcast %c128_i32 : i32 to vector<1x128xi32>
    %71 = arith.muli %69, %70 : vector<1x128xi32>
    %72 = arith.addi %71, %66 : vector<1x128xi32>
    %c100_i32 = arith.constant 100 : i32
    %73 = vector.broadcast %c100_i32 : i32 to vector<1x128xi32>
    %74 = arith.cmpi slt, %72, %73 : vector<1x128xi32>
    %cst_25 = arith.constant 0.000000e+00 : f32
    %75 = vector.broadcast %cst_25 : f32 to vector<1x128xf32>
    %76 = arith.select %74, %64, %75 : vector<1x128xi1>, vector<1x128xf32>
    %c0_26 = arith.constant 0 : index
    %c0_27 = arith.constant 0 : index
    %77 = vector.load %arg4[%c0_26, %c0_27] : memref<1x128xf32, #tpu.memory_space<vmem>>, vector<1x128xf32>
    %78 = arith.addf %77, %76 : vector<1x128xf32>
    %c0_28 = arith.constant 0 : index
    %c0_29 = arith.constant 0 : index
    %79 = vector.load %arg4[%c0_28, %c0_29] : memref<1x128xf32, #tpu.memory_space<vmem>>, vector<1x128xf32>
    tpu.vector_store %arg4[%c0_28, %c0_29], %78 {strides = array<i32>} : memref<1x128xf32, #tpu.memory_space<vmem>>, vector<1x128xf32>,
    %c0_i32_30 = arith.constant 0 : i32
    %80 = arith.cmpi eq, %arg0, %c0_i32_30 : i32
    %81 = arith.extui %80 : i1 to i32
    %c0_i32_31 = arith.constant 0 : i32
    %82 = arith.cmpi ne, %81, %c0_i32_31 : i32
    scf.if %82 {
      %c0_32 = arith.constant 0 : index
      %c0_33 = arith.constant 0 : index
      %83 = vector.load %arg4[%c0_32, %c0_33] : memref<1x128xf32, #tpu.memory_space<vmem>>, vector<1x128xf32>
      %84 = vector.shape_cast %83 : vector<1x128xf32> to vector<1x1x128xf32>
      %cst_34 = arith.constant dense<0.000000e+00> : vector<1xf32>
      %85 = vector.multi_reduction <add>, %84, %cst_34 [1, 2] : vector<1x1x128xf32> to vector<1xf32>
      %86 = vector.shape_cast %85 : vector<1xf32> to vector<1x1x1xf32>
      %87 = vector.extract %86[0, 0, 0] : f32 from vector<1x1x1xf32>
      %88 = vector.broadcast %87 : f32 to vector<1x1xf32>
      %cst_35 = arith.constant 1.000000e+00 : f32
      %cst_36 = arith.constant 1.000000e+02 : f32
      %89 = arith.divf %cst_35, %cst_36 : f32
      %90 = vector.broadcast %89 : f32 to vector<1x1xf32>
      %91 = arith.mulf %88, %90 : vector<1x1xf32>
      %c0_37 = arith.constant 0 : index
      %c0_38 = arith.constant 0 : index
      %92 = vector.load %arg3[%c0_37, %c0_38] : memref<1x1xf32, #tpu.memory_space<vmem>>, vector<1x1xf32>
      tpu.vector_store %arg3[%c0_37, %c0_38], %91 {strides = array<i32>} : memref<1x1xf32, #tpu.memory_space<vmem>>, vector<1x1xf32>,
    } else {
    }
    return
  }
  func.func @transform_0(%arg0: i32) -> (i32, i32, i32) {
    %c0_i32 = arith.constant 0 : i32
    %c0_i32_0 = arith.constant 0 : i32
    %c0_i32_1 = arith.constant 0 : i32
    return %c0_i32, %arg0, %c0_i32_0 : i32, i32, i32
  }
  func.func @transform_1(%arg0: i32) -> (i32, i32, i32) {
    %c0_i32 = arith.constant 0 : i32
    %c0_i32_0 = arith.constant 0 : i32
    %c0_i32_1 = arith.constant 0 : i32
    return %c0_i32, %arg0, %c0_i32_0 : i32, i32, i32
  }
  func.func @transform_2(%arg0: i32) -> (i32, i32) {
    %c0_i32 = arith.constant 0 : i32
    %c0_i32_0 = arith.constant 0 : i32
    %c0_i32_1 = arith.constant 0 : i32
    return %c0_i32, %c0_i32_0 : i32, i32
  }
}

</mosaic_0001>

<llo_original>
// kernel: tpu_custom_call.1
$region0: #{tpu_custom_call.1}
  #allocation0 [shape = 'u32[]', space=smem, size = 0x4, offset = 0x4, fixed_abs, tag = 'smem constant byte address 0x4 - core index']
  #allocation1 [shape = 'u32[144,128]{1,0:T(1,128)}', space=vmem, size = 0x12000, scoped, tag = 'internal scratch']
  #allocation2 [shape = 'f32[1,128]{1,0:T(1,128)}', space=vmem, size = 0x200, scoped, tag = 'scratch operand']
  %s0 = inlined_call_operand.hbm [shape: f32[4,1,128], index: 0, kind: input, shape index: {}]
  %s1 = inlined_call_operand.hbm [shape: f32[4,1,128], index: 1, kind: input, shape index: {}]
  %s2 = inlined_call_operand.hbm [shape: f32[1,1], index: 2, kind: output, shape index: {}]
  %s3 = sld [smem:[#allocation0]]
  $region34: #{tpu_custom_call.1} parent=0
    _
  %s5 = ssub.s32 1, %s3
  %s6 = scalar_select 0, %s5, %s3
  $region1: #{tpu_custom_call.1} parent=0
    #allocation3 [shape = 'u8[2048]{0}', space=vmem, size = 0x800, scoped, tag = 'input window, operand 0, single buffered']
    #allocation4 [shape = 's32[1]{0}', space=sflag, size = 0x4, scoped, tag = 'scoped memory for tpu_custom_call.1']
    #allocation5 [shape = 's32[1]{0}', space=sflag, size = 0x4, scoped, tag = 'scoped memory for tpu_custom_call.1']
    #allocation6 [shape = 'u8[2048]{0}', space=vmem, size = 0x800, scoped, tag = 'input window, operand 1, single buffered']
    #allocation7 [shape = 's32[1]{0}', space=sflag, size = 0x4, scoped, tag = 'scoped memory for tpu_custom_call.1']
    #allocation8 [shape = 'u8[512]{0}', space=vmem, size = 0x400, scoped, tag = 'output window, operand 0, single buffered']
    %7 = vsyncpa [#allocation4], 0
    %8 = vsyncpa [#allocation7], 0
    %9 = vsyncpa [#allocation5], 0
    // Predicated region
    $region2: #{tpu_custom_call.1} parent=1 // pred_check
      _
    $region3: #{tpu_custom_call.1} parent=1 // pred_check_branch
      %11 = sbr.rel (0) target = $region5
    $region4: #{tpu_custom_call.1} parent=1 // pred_region
      %s13 = ssub.s32 64, 64
      %14 = vsyncadd [#allocation4], %s13
      %s15 = sshll.u32 [#allocation3], 4
      %s16 = int_to_ptr.vmem [resolvable:$true] %s15
      %21 = dma.hbm_to_vmem [thread:$0]  %s0, 64, %s16, [#allocation4], 16, 16, 1
    $region5: #{tpu_custom_call.1} parent=1 // pred_fallthru
      _
    // Predicated region
    $region6: #{tpu_custom_call.1} parent=1 // pred_check
      _
    $region7: #{tpu_custom_call.1} parent=1 // pred_check_branch
      %23 = sbr.rel (0) target = $region9
    $region8: #{tpu_custom_call.1} parent=1 // pred_region
      %s25 = ssub.s32 64, 64
      %26 = vsyncadd [#allocation7], %s25
      %s27 = sshll.u32 [#allocation6], 4
      %s28 = int_to_ptr.vmem [resolvable:$true] %s27
      %33 = dma.hbm_to_vmem [thread:$0]  %s1, 64, %s28, [#allocation7], 16, 16, 1
    $region9: #{tpu_custom_call.1} parent=1 // pred_fallthru
      _
    // Predicated region
    $region10: #{tpu_custom_call.1} parent=1 // pred_check
      _
    $region11: #{tpu_custom_call.1} parent=1 // pred_check_branch
      %35 = sbr.rel (0) target = $region13
    $region12: #{tpu_custom_call.1} parent=1 // pred_region
      %36 = dma.done [#allocation4], 64
    $region13: #{tpu_custom_call.1} parent=1 // pred_fallthru
      _
    // Predicated region
    $region14: #{tpu_custom_call.1} parent=1 // pred_check
      _
    $region15: #{tpu_custom_call.1} parent=1 // pred_check_branch
      %38 = sbr.rel (0) target = $region17
    $region16: #{tpu_custom_call.1} parent=1 // pred_region
      %39 = dma.done [#allocation7], 64
    $region17: #{tpu_custom_call.1} parent=1 // pred_fallthru
      _
    %p40 = scmp.eq.s32.totalorder 0, 0
    // Predicated region
    $region18: #{tpu_custom_call.1} parent=1 // pred_check
      %p41 = pneg %p40
    $region19: #{tpu_custom_call.1} parent=1 // pred_check_branch
      %43 = sbr.rel (%p41) target = $region21
    $region20: #{tpu_custom_call.1} parent=1 // pred_region
      %44 = vst [vmem:[#allocation2] sm:$0x1] 0.0
    $region21: #{tpu_custom_call.1} parent=1 // pred_fallthru
      _
    %v45 = vld [vmem:[#allocation3] sm:$0x1]
    %s46 = scalar_lea.vmem [#allocation3], 1
    %v47 = vld [vmem:[%s46] sm:$0x1]
    %s48 = scalar_lea.vmem [#allocation3], 2
    %v49 = vld [vmem:[%s48] sm:$0x1]
    %s50 = scalar_lea.vmem [#allocation3], 3
    %v51 = vld [vmem:[%s50] sm:$0x1]
    %v52 = vld [vmem:[#allocation6] sm:$0x1]
    %s53 = scalar_lea.vmem [#allocation6], 1
    %v54 = vld [vmem:[%s53] sm:$0x1]
    %s55 = scalar_lea.vmem [#allocation6], 2
    %v56 = vld [vmem:[%s55] sm:$0x1]
    %s57 = scalar_lea.vmem [#allocation6], 3
    %v58 = vld [vmem:[%s57] sm:$0x1]
    %v59 = vsub.f32 %v49, %v45
    %v60 = vsub.f32 %v51, %v47
    %v61 = vmul.f32 %v59, %v60
    %v62 = vsub.f32 %v56, %v52
    %v63 = vsub.f32 %v58, %v54
    %v64 = vmul.f32 %v62, %v63
    %v65 = vmin.f32 %v49, %v56
    %v66 = vmax.f32 %v45, %v52
    %v67 = vsub.f32 %v65, %v66
    %v68 = vmax.f32 %v67, 0.0
    %v69 = vmin.f32 %v51, %v58
    %v70 = vmax.f32 %v47, %v54
    %v71 = vsub.f32 %v69, %v70
    %v72 = vmax.f32 %v71, 0.0
    %v73 = vmul.f32 %v68, %v72
    %v74 = vadd.f32 %v61, %v64
    %v75 = vsub.f32 %v74, %v73
    %v76 = vadd.f32 %v75, 1e-06
    %v77 = vrcp.pop %v76
    %v78 = vmul.f32 %v73, %v77
    %v79 = vadd.f32 %v45, %v49
    %v80 = vsub.f32 %v79, %v52
    %v81 = vsub.f32 %v80, %v56
    %v82 = vmul.f32 %v81, %v81
    %v83 = vadd.f32 %v47, %v51
    %v84 = vsub.f32 %v83, %v54
    %v85 = vsub.f32 %v84, %v58
    %v86 = vmul.f32 %v85, %v85
    %v87 = vadd.f32 %v82, %v86
    %v88 = vmax.f32 %v49, %v56
    %v89 = vmin.f32 %v45, %v52
    %v90 = vsub.f32 %v88, %v89
    %v91 = vmul.f32 %v90, %v90
    %v92 = vmax.f32 %v51, %v58
    %v93 = vmin.f32 %v47, %v54
    %v94 = vsub.f32 %v92, %v93
    %v95 = vmul.f32 %v94, %v94
    %v96 = vadd.f32 %v91, %v95
    %v97 = vadd.f32 %v96, 1e-06
    %v98 = vrcp.pop %v97
    %v99 = vmul.f32 %v87, %v98
    %v100 = vsub.f32 %v78, %v99
    %v101 = vsub.f32 1.0, %v100
    %v102 = vlaneseq
    %v103 = vshrl.u32 %v102, 7
    %v104 = vlaneseq
    %v105 = vand.u32 %v104, 127
    %v106 = vstv 0
    %v107 = vadd.s32 %v106, %v103
    %v108 = vmul.u32 %v107, 128
    %v109 = vadd.s32 %v108, %v105
    %vm110 = vcmp.lt.s32.totalorder %v109, 100
    %v111 = vsel %vm110, %v101, 0.0
    %v112 = vld [vmem:[#allocation2] sm:$0x1]
    %v113 = vadd.f32 %v112, %v111
    %114 = vst [vmem:[#allocation2] sm:$0x1] %v113
    // Predicated region
    $region22: #{tpu_custom_call.1} parent=1 // pred_check
      %p115 = pneg %p40
    $region23: #{tpu_custom_call.1} parent=1 // pred_check_branch
      %117 = sbr.rel (%p115) target = $region25
    $region24: #{tpu_custom_call.1} parent=1 // pred_region
      %v118 = vld [vmem:[#allocation2] sm:$0x1]
      %vm119 = vcmask 1040384
      %v120 = vsel %vm119, %v118, 0.0
      %121 = vadd.xlane.f32.xlu0 %v120
      %v122 = vpop.xlane.xlu0 %121
      %v123 = vrot.slane %v122, 4
      %v124 = vadd.f32 %v122, %v123
      %v125 = vrot.slane %v124, 2
      %v126 = vadd.f32 %v124, %v125
      %v127 = vrot.slane %v126, 1
      %v128 = vadd.f32 %v126, %v127
      %s129 = vtos %v128
      %v130 = vstv %s129
      %v131 = vmul.f32 %v130, 0.01
      %vm132 = vcmask 0
      %133 = vst.msk [vmem:[#allocation8] sm:$0x1] %vm132, %v131
    $region25: #{tpu_custom_call.1} parent=1 // pred_fallthru
      _
    // Predicated region
    $region26: #{tpu_custom_call.1} parent=1 // pred_check
      _
    $region27: #{tpu_custom_call.1} parent=1 // pred_check_branch
      %135 = sbr.rel (0) target = $region29
    $region28: #{tpu_custom_call.1} parent=1 // pred_region
      %s137 = ssub.s32 16, 16
      %138 = vsyncadd [#allocation5], %s137
      %s140 = sshll.u32 [#allocation8], 4
      %s141 = int_to_ptr.vmem [resolvable:$true] %s140
      %143 = dma.vmem_to_hbm [thread:$0]  %s141, 16, %s2, [#allocation5]
    $region29: #{tpu_custom_call.1} parent=1 // pred_fallthru
      _
    // Predicated region
    $region30: #{tpu_custom_call.1} parent=1 // pred_check
      _
    $region31: #{tpu_custom_call.1} parent=1 // pred_check_branch
      %145 = sbr.rel (0) target = $region33
    $region32: #{tpu_custom_call.1} parent=1 // pred_region
      %146 = dma.done [#allocation5], 16
    $region33: #{tpu_custom_call.1} parent=1 // pred_fallthru
      _
    %147 = vsyncpa [#allocation4], 1
    %148 = vsyncpa [#allocation7], 1
    %149 = vsyncpa [#allocation5], 1

</llo_original>
